<compile_context>
chip_gen: v5e
topology: v5e:2x2
jax: 0.10.0
libtpu: 0.0.40
codegen_flags: <defaults>
</compile_context>

<pallas_src>
import jax
import jax.numpy as jnp
import numpy as np
from jax import lax
from jax.experimental import pallas as pl
from jax.experimental.pallas import tpu as pltpu

# ----------------------------- config (synthetic) ----------------------------
HID_DIM   = 32     # config._hid_dim
NUM_HEADS = 4      # config._num_heads
STADIA    = 4      # config._stadia
LN_EPS    = 1e-5   # nn.LayerNorm default
B, N      = 2, 16  # batch (graphs), number of nodes
BN        = B * N
HEAD_DIM  = HID_DIM // NUM_HEADS
NEG_INF   = -1e9   # masked_fill value
N_REL     = 2 * STADIA + 1


# ------------------------------- Pallas kernel -------------------------------
def _uni_attn_conv_kernel(hid_ref, bias_ref, bmask_ref, wbig_ref, wfc1_ref,
                          misc_ref, out_ref):
    hid = hid_ref[...]                                   # (BN, H)  f32
    hid_bf = hid.astype(jnp.bfloat16)

    # --- fused projection: [Q | K | V | Wfc_hid] in ONE lane-dense matmul ---
    proj = jnp.dot(hid_bf, wbig_ref[...],
                   preferred_element_type=jnp.float32)   # (BN, 4H) f32
    q   = proj[:, 0 * HID_DIM:1 * HID_DIM]               # (BN, H)
    k   = proj[:, 1 * HID_DIM:2 * HID_DIM]
    v   = proj[:, 2 * HID_DIM:3 * HID_DIM]
    fch = proj[:, 3 * HID_DIM:4 * HID_DIM]               # hid-half of direct_fc

    bmask = bmask_ref[...]                               # (NUM_HEADS*BN, H) 0/1

    # --- stacked-head attention: heads along the sublane axis ---
    # Q_stack row (h*BN + i) keeps only head-h feature columns of q[i].
    q_stack = jnp.concatenate([q] * NUM_HEADS, axis=0) * bmask   # (4*BN, H)

    # ONE score matmul for all heads; contract last dims (no K transpose).
    dn = (((1,), (1,)), ((), ()))
    s = lax.dot_general(q_stack.astype(jnp.bfloat16), k.astype(jnp.bfloat16),
                        dn, preferred_element_type=jnp.float32)  # (4*BN, BN)

    scale = 1.0 / (float(HID_DIM) ** 0.5)                # / sqrt(key_dim)
    bias = bias_ref[...]                                 # (BN, BN): rel or NEG_INF
    s = s * scale + jnp.concatenate([bias] * NUM_HEADS, axis=0)

    # ONE softmax over the stacked scores.
    s = s - jnp.max(s, axis=-1, keepdims=True)
    p = jnp.exp(s)
    p = p * pl.reciprocal(jnp.sum(p, axis=-1, keepdims=True), approx=True)
    # TODO(synk): dropout on attention probs omitted (eval mode / p=0)

    # ONE P @ V; the per-head V column mask commutes to the matmul output:
    # p @ (v * hmask) == (p @ v) * hmask.
    r = jnp.dot(p.astype(jnp.bfloat16), v.astype(jnp.bfloat16),
                preferred_element_type=jnp.float32)      # (4*BN, H)
    r = r * bmask
    acc = r[0:BN]
    for h in range(1, NUM_HEADS):                        # static sublane slices
        acc = acc + r[h * BN:(h + 1) * BN]               # (BN, H) concat-of-heads

    # --- direct_fc over cat([hid, attn]) without the concat ---
    misc = misc_ref[...]                                 # (3, H): b_fc, gamma, beta
    fc = (fch
          + jnp.dot(acc.astype(jnp.bfloat16), wfc1_ref[...],
                    preferred_element_type=jnp.float32)
          + misc[0:1, :])

    # --- activation, residual, LayerNorm ---
    act = jnp.maximum(fc, 0.0)                           # relu
    res = act + hid
    mean = jnp.mean(res, axis=-1, keepdims=True)
    var = jnp.mean((res - mean) ** 2, axis=-1, keepdims=True)
    normed = (res - mean) * lax.rsqrt(var + LN_EPS)
    out_ref[...] = (normed * misc[1:2, :] + misc[2:3, :]).astype(out_ref.dtype)


# ---------------------------------- wrapper ----------------------------------
def uni_attention_convolution(adj, relative_pos, hid, params):
    """Pallas forward of UniAttentionConvolution (single kernel invocation)."""
    hid2d = hid.reshape(BN, HID_DIM)

    # Precomputed f32 additive bias (BN, BN): relative-position embedding where
    # (same graph AND adjacent), NEG_INF elsewhere (also kills cross-graph
    # attention introduced by flattening B graphs into BN rows).
    rel_idx = jnp.clip(relative_pos, -STADIA, STADIA) + STADIA        # (B,N,N)
    rel_bias = params["rel_emb_table"][rel_idx, 0]                    # (B,N,N)
    bi = jnp.arange(B)
    same = bi[:, None, None, None] == bi[None, None, :, None]         # (B,1,B,1)
    bias = jnp.where(same & (adj[:, :, None, :] != 0.0),
                     rel_bias[:, :, None, :],
                     NEG_INF).astype(jnp.float32).reshape(BN, BN)

    # Trace-time constant head block mask (NUM_HEADS*BN, H).
    bmask_np = np.zeros((NUM_HEADS * BN, HID_DIM), np.float32)
    for h in range(NUM_HEADS):
        bmask_np[h * BN:(h + 1) * BN, h * HEAD_DIM:(h + 1) * HEAD_DIM] = 1.0
    bmask = jnp.asarray(bmask_np)

    # Fused lane-dense projection weight (H, 4H) and attn-half of direct_fc,
    # cast to bf16 for native MXU inputs (accumulation stays f32 in-kernel).
    wbig = jnp.concatenate(
        [params["wq"], params["wk"], params["wv"], params["wfc"][:HID_DIM]],
        axis=1).astype(jnp.bfloat16)                                  # (H, 4H)
    wfc1 = params["wfc"][HID_DIM:].astype(jnp.bfloat16)               # (H, H)
    misc = jnp.stack([params["bfc"], params["ln_gamma"], params["ln_beta"]], 0)

    out2d = pl.pallas_call(
        _uni_attn_conv_kernel,
        out_shape=jax.ShapeDtypeStruct((BN, HID_DIM), jnp.float32),
        in_specs=[
            pl.BlockSpec(memory_space=pltpu.MemorySpace.VMEM),   # hid2d
            pl.BlockSpec(memory_space=pltpu.MemorySpace.VMEM),   # bias
            pl.BlockSpec(memory_space=pltpu.MemorySpace.VMEM),   # head block mask
            pl.BlockSpec(memory_space=pltpu.MemorySpace.VMEM),   # fused proj W
            pl.BlockSpec(memory_space=pltpu.MemorySpace.VMEM),   # W_fc attn half
            pl.BlockSpec(memory_space=pltpu.MemorySpace.VMEM),   # b_fc/gamma/beta
        ],
        out_specs=pl.BlockSpec(memory_space=pltpu.MemorySpace.VMEM),
    )(hid2d, bias, bmask, wbig, wfc1, misc)
    return out2d.reshape(B, N, HID_DIM)


# --------------------------- pure-JAX reference -------------------------------
def reference_forward(adj, relative_pos, hid, params):
    idx = jnp.clip(relative_pos, -STADIA, STADIA) + STADIA
    rel = params["rel_emb_table"][idx, 0]
    q = hid @ params["wq"]
    k = hid @ params["wk"]
    v = hid @ params["wv"]
    mask = adj != 0.0
    scale = 1.0 / (float(HID_DIM) ** 0.5)
    outs = []
    for h in range(NUM_HEADS):
        lo, hi = h * HEAD_DIM, (h + 1) * HEAD_DIM
        s = jnp.einsum("bnd,bmd->bnm", q[..., lo:hi], k[..., lo:hi]) * scale + rel
        s = jnp.where(mask, s, NEG_INF)
        p = jax.nn.softmax(s, axis=-1)
        outs.append(jnp.einsum("bnm,bmd->bnd", p, v[..., lo:hi]))
    attn = jnp.concatenate(outs, axis=-1)
    cat = jnp.concatenate([hid, attn], axis=-1)
    fc = cat @ params["wfc"] + params["bfc"]
    act = jnp.maximum(fc, 0.0)
    res = act + hid
    mean = jnp.mean(res, axis=-1, keepdims=True)
    var = jnp.mean((res - mean) ** 2, axis=-1, keepdims=True)
    normed = (res - mean) * lax.rsqrt(var + LN_EPS)
    return normed * params["ln_gamma"] + params["ln_beta"]


# ----------------------------------- main -------------------------------------
if __name__ == "__main__":
    key = jax.random.PRNGKey(0)
    keys = jax.random.split(key, 10)

    # deterministic parameter init (synthetic, not a checkpoint)
    params = {
        "rel_emb_table": 0.1 * jax.random.normal(keys[0], (N_REL, 1), jnp.float32),
        "wq":  0.1 * jax.random.normal(keys[1], (HID_DIM, HID_DIM), jnp.float32),
        "wk":  0.1 * jax.random.normal(keys[2], (HID_DIM, HID_DIM), jnp.float32),
        "wv":  0.1 * jax.random.normal(keys[3], (HID_DIM, HID_DIM), jnp.float32),
        "wfc": 0.1 * jax.random.normal(keys[4], (2 * HID_DIM, HID_DIM), jnp.float32),
        "bfc": 0.01 * jax.random.normal(keys[5], (HID_DIM,), jnp.float32),
        "ln_gamma": jnp.ones((HID_DIM,), jnp.float32),
        "ln_beta": jnp.zeros((HID_DIM,), jnp.float32),
    }

    # deterministic inputs
    hid = jax.random.normal(keys[6], (B, N, HID_DIM), jnp.float32)
    adj = (jax.random.uniform(keys[7], (B, N, N)) > 0.5).astype(jnp.float32)
    # make sure the diagonal is connected so no row is fully masked
    adj = jnp.maximum(adj, jnp.eye(N, dtype=jnp.float32)[None])
    pos = jnp.arange(N, dtype=jnp.int32)
    relative_pos = jnp.broadcast_to(pos[None, :, None] - pos[None, None, :], (B, N, N))

    out = uni_attention_convolution(adj, relative_pos, hid, params)
    out = jax.block_until_ready(out)

    ref = reference_forward(adj, relative_pos, hid, params)
    # Tolerance covers the intentional deviations: bf16 MXU inputs (f32
    # accumulation) and the EUP approximate reciprocal in the softmax.
    np.testing.assert_allclose(np.asarray(out), np.asarray(ref), atol=3e-2, rtol=3e-2)

    print("KERNEL_OK")
</pallas_src>

<mosaic_0001>
module attributes {stable_mosaic.version = 11 : i64} {
  func.func @_uni_attn_conv_kernel(%arg0: memref<32x32xf32, #tpu.memory_space<vmem>>, %arg1: memref<32x32xf32, #tpu.memory_space<vmem>>, %arg2: memref<128x32xf32, #tpu.memory_space<vmem>>, %arg3: memref<32x128xbf16, #tpu.memory_space<vmem>>, %arg4: memref<32x32xbf16, #tpu.memory_space<vmem>>, %arg5: memref<3x32xf32, #tpu.memory_space<vmem>>, %arg6: memref<32x32xf32, #tpu.memory_space<vmem>>) attributes {dimension_semantics = [], scalar_prefetch = 0 : i64, scratch_operands = 0 : i64, tpu.core_type = #tpu.core_type<tc>} {
    %c0 = arith.constant 0 : index
    %c0_0 = arith.constant 0 : index
    %0 = vector.load %arg0[%c0, %c0_0] : memref<32x32xf32, #tpu.memory_space<vmem>>, vector<32x32xf32>
    %1 = arith.truncf %0 : vector<32x32xf32> to vector<32x32xbf16>
    %c0_1 = arith.constant 0 : index
    %c0_2 = arith.constant 0 : index
    %2 = vector.load %arg3[%c0_1, %c0_2] : memref<32x128xbf16, #tpu.memory_space<vmem>>, vector<32x128xbf16>
    %cst = arith.constant dense<0.000000e+00> : vector<32x128xf32>
    %3 = tpu.matmul %1, %2, %cst {dimension_numbers = #tpu.dot_dimension_numbers<[1], [0], [0], [1], [0, 0, 1, 1], [], []>} : vector<32x32xbf16>, vector<32x128xbf16>, vector<32x128xf32> -> vector<32x128xf32>
    %4 = vector.extract_strided_slice %3 {offsets = [0, 0], sizes = [32, 32], strides = [1, 1]} : vector<32x128xf32> to vector<32x32xf32>
    %5 = vector.extract_strided_slice %3 {offsets = [0, 32], sizes = [32, 32], strides = [1, 1]} : vector<32x128xf32> to vector<32x32xf32>
    %6 = vector.extract_strided_slice %3 {offsets = [0, 64], sizes = [32, 32], strides = [1, 1]} : vector<32x128xf32> to vector<32x32xf32>
    %7 = vector.extract_strided_slice %3 {offsets = [0, 96], sizes = [32, 32], strides = [1, 1]} : vector<32x128xf32> to vector<32x32xf32>
    %c0_3 = arith.constant 0 : index
    %c0_4 = arith.constant 0 : index
    %8 = vector.load %arg2[%c0_3, %c0_4] : memref<128x32xf32, #tpu.memory_space<vmem>>, vector<128x32xf32>
    %9 = tpu.concatenate %4, %4, %4, %4 in 0 : vector<32x32xf32>, vector<32x32xf32>, vector<32x32xf32>, vector<32x32xf32> -> vector<128x32xf32>
    %10 = arith.mulf %9, %8 : vector<128x32xf32>
    %11 = arith.truncf %10 : vector<128x32xf32> to vector<128x32xbf16>
    %12 = arith.truncf %5 : vector<32x32xf32> to vector<32x32xbf16>
    %cst_5 = arith.constant dense<0.000000e+00> : vector<128x32xf32>
    %13 = tpu.matmul %11, %12, %cst_5 {dimension_numbers = #tpu.dot_dimension_numbers<[1], [1], [0], [0], [0, 0, 1, 0], [], []>} : vector<128x32xbf16>, vector<32x32xbf16>, vector<128x32xf32> -> vector<128x32xf32>
    %c0_6 = arith.constant 0 : index
    %c0_7 = arith.constant 0 : index
    %14 = vector.load %arg1[%c0_6, %c0_7] : memref<32x32xf32, #tpu.memory_space<vmem>>, vector<32x32xf32>
    %cst_8 = arith.constant 0.176776692 : f32
    %15 = vector.broadcast %cst_8 : f32 to vector<128x32xf32>
    %16 = arith.mulf %13, %15 : vector<128x32xf32>
    %17 = tpu.concatenate %14, %14, %14, %14 in 0 : vector<32x32xf32>, vector<32x32xf32>, vector<32x32xf32>, vector<32x32xf32> -> vector<128x32xf32>
    %18 = arith.addf %16, %17 : vector<128x32xf32>
    %cst_9 = arith.constant dense<0xFF800000> : vector<128xf32>
    %19 = vector.multi_reduction <maximumf>, %18, %cst_9 [1] : vector<128x32xf32> to vector<128xf32>
    %20 = vector.shape_cast %19 : vector<128xf32> to vector<128x1xf32>
    %21 = vector.broadcast %20 : vector<128x1xf32> to vector<128x32xf32>
    %22 = arith.subf %18, %21 : vector<128x32xf32>
    %23 = math.exp %22 : vector<128x32xf32>
    %cst_10 = arith.constant dense<0.000000e+00> : vector<128xf32>
    %24 = vector.multi_reduction <add>, %23, %cst_10 [1] : vector<128x32xf32> to vector<128xf32>
    %25 = vector.shape_cast %24 : vector<128xf32> to vector<128x1xf32>
    %26 = tpu.reciprocal %25 {approx = true} : vector<128x1xf32> -> vector<128x1xf32>
    %27 = vector.broadcast %26 : vector<128x1xf32> to vector<128x32xf32>
    %28 = arith.mulf %23, %27 : vector<128x32xf32>
    %29 = arith.truncf %28 : vector<128x32xf32> to vector<128x32xbf16>
    %30 = arith.truncf %6 : vector<32x32xf32> to vector<32x32xbf16>
    %cst_11 = arith.constant dense<0.000000e+00> : vector<128x32xf32>
    %31 = tpu.matmul %29, %30, %cst_11 {dimension_numbers = #tpu.dot_dimension_numbers<[1], [0], [0], [1], [0, 0, 1, 1], [], []>} : vector<128x32xbf16>, vector<32x32xbf16>, vector<128x32xf32> -> vector<128x32xf32>
    %32 = arith.mulf %31, %8 : vector<128x32xf32>
    %33 = vector.extract_strided_slice %32 {offsets = [0, 0], sizes = [32, 32], strides = [1, 1]} : vector<128x32xf32> to vector<32x32xf32>
    %34 = vector.extract_strided_slice %32 {offsets = [32, 0], sizes = [32, 32], strides = [1, 1]} : vector<128x32xf32> to vector<32x32xf32>
    %35 = arith.addf %33, %34 : vector<32x32xf32>
    %36 = vector.extract_strided_slice %32 {offsets = [64, 0], sizes = [32, 32], strides = [1, 1]} : vector<128x32xf32> to vector<32x32xf32>
    %37 = arith.addf %35, %36 : vector<32x32xf32>
    %38 = vector.extract_strided_slice %32 {offsets = [96, 0], sizes = [32, 32], strides = [1, 1]} : vector<128x32xf32> to vector<32x32xf32>
    %39 = arith.addf %37, %38 : vector<32x32xf32>
    %c0_12 = arith.constant 0 : index
    %c0_13 = arith.constant 0 : index
    %40 = vector.load %arg5[%c0_12, %c0_13] : memref<3x32xf32, #tpu.memory_space<vmem>>, vector<3x32xf32>
    %41 = arith.truncf %39 : vector<32x32xf32> to vector<32x32xbf16>
    %c0_14 = arith.constant 0 : index
    %c0_15 = arith.constant 0 : index
    %42 = vector.load %arg4[%c0_14, %c0_15] : memref<32x32xbf16, #tpu.memory_space<vmem>>, vector<32x32xbf16>
    %cst_16 = arith.constant dense<0.000000e+00> : vector<32x32xf32>
    %43 = tpu.matmul %41, %42, %cst_16 {dimension_numbers = #tpu.dot_dimension_numbers<[1], [0], [0], [1], [0, 0, 1, 1], [], []>} : vector<32x32xbf16>, vector<32x32xbf16>, vector<32x32xf32> -> vector<32x32xf32>
    %44 = arith.addf %7, %43 : vector<32x32xf32>
    %45 = vector.extract_strided_slice %40 {offsets = [0, 0], sizes = [1, 32], strides = [1, 1]} : vector<3x32xf32> to vector<1x32xf32>
    %46 = vector.broadcast %45 : vector<1x32xf32> to vector<32x32xf32>
    %47 = arith.addf %44, %46 : vector<32x32xf32>
    %cst_17 = arith.constant 0.000000e+00 : f32
    %48 = vector.broadcast %cst_17 : f32 to vector<32x32xf32>
    %49 = arith.maximumf %47, %48 : vector<32x32xf32>
    %50 = arith.addf %49, %0 : vector<32x32xf32>
    %cst_18 = arith.constant dense<0.000000e+00> : vector<32xf32>
    %51 = vector.multi_reduction <add>, %50, %cst_18 [1] : vector<32x32xf32> to vector<32xf32>
    %52 = vector.shape_cast %51 : vector<32xf32> to vector<32x1xf32>
    %cst_19 = arith.constant 3.200000e+01 : f32
    %53 = vector.broadcast %cst_19 : f32 to vector<32x1xf32>
    %54 = arith.divf %52, %53 : vector<32x1xf32>
    %55 = vector.broadcast %54 : vector<32x1xf32> to vector<32x32xf32>
    %56 = arith.subf %50, %55 : vector<32x32xf32>
    %57 = arith.mulf %56, %56 : vector<32x32xf32>
    %cst_20 = arith.constant dense<0.000000e+00> : vector<32xf32>
    %58 = vector.multi_reduction <add>, %57, %cst_20 [1] : vector<32x32xf32> to vector<32xf32>
    %59 = vector.shape_cast %58 : vector<32xf32> to vector<32x1xf32>
    %cst_21 = arith.constant 3.200000e+01 : f32
    %60 = vector.broadcast %cst_21 : f32 to vector<32x1xf32>
    %61 = arith.divf %59, %60 : vector<32x1xf32>
    %62 = vector.broadcast %54 : vector<32x1xf32> to vector<32x32xf32>
    %63 = arith.subf %50, %62 : vector<32x32xf32>
    %cst_22 = arith.constant 9.99999974E-6 : f32
    %64 = vector.broadcast %cst_22 : f32 to vector<32x1xf32>
    %65 = arith.addf %61, %64 : vector<32x1xf32>
    %66 = math.rsqrt %65 : vector<32x1xf32>
    %67 = vector.broadcast %66 : vector<32x1xf32> to vector<32x32xf32>
    %68 = arith.mulf %63, %67 : vector<32x32xf32>
    %69 = vector.extract_strided_slice %40 {offsets = [1, 0], sizes = [1, 32], strides = [1, 1]} : vector<3x32xf32> to vector<1x32xf32>
    %70 = vector.broadcast %69 : vector<1x32xf32> to vector<32x32xf32>
    %71 = arith.mulf %68, %70 : vector<32x32xf32>
    %72 = vector.extract_strided_slice %40 {offsets = [2, 0], sizes = [1, 32], strides = [1, 1]} : vector<3x32xf32> to vector<1x32xf32>
    %73 = vector.broadcast %72 : vector<1x32xf32> to vector<32x32xf32>
    %74 = arith.addf %71, %73 : vector<32x32xf32>
    %c0_23 = arith.constant 0 : index
    %c0_24 = arith.constant 0 : index
    %75 = vector.load %arg6[%c0_23, %c0_24] : memref<32x32xf32, #tpu.memory_space<vmem>>, vector<32x32xf32>
    tpu.vector_store %arg6[%c0_23, %c0_24], %74 {strides = array<i32>} : memref<32x32xf32, #tpu.memory_space<vmem>>, vector<32x32xf32>,
    return
  }
}

</mosaic_0001>

<llo_original>
// kernel: tpu_custom_call.1
$region0: #{tpu_custom_call.1}
  #allocation0 [shape = 'u32[]', space=smem, size = 0x4, offset = 0x4, fixed_abs, tag = 'smem constant byte address 0x4 - core index']
  #allocation1 [shape = 'u32[72,128]{1,0:T(1,128)}', space=vmem, size = 0x9000, scoped, tag = 'internal scratch']
  %s0 = inlined_call_operand.vmem [shape: f32[32,32], index: 0, kind: input, shape index: {}]
  %s1 = inlined_call_operand.vmem [shape: f32[32,32], index: 1, kind: input, shape index: {}]
  %s2 = inlined_call_operand.vmem [shape: f32[128,32], index: 2, kind: input, shape index: {}]
  %s3 = inlined_call_operand.vmem [shape: bf16[32,128], index: 3, kind: input, shape index: {}]
  %s4 = inlined_call_operand.vmem [shape: bf16[32,32], index: 4, kind: input, shape index: {}]
  %s5 = inlined_call_operand.vmem [shape: f32[3,32], index: 5, kind: input, shape index: {}]
  %s6 = inlined_call_operand.hbm [shape: f32[32,32], index: 6, kind: output, shape index: {}]
  %s7 = sld [smem:[#allocation0]]
  $region34: #{tpu_custom_call.1} parent=0
    _
  %s9 = ssub.s32 1, %s7
  %s10 = scalar_select 0, %s9, %s7
  $region1: #{tpu_custom_call.1} parent=0
    #allocation2 [shape = 'u8[16384]{0}', space=vmem, size = 0x4000, scoped, tag = 'output window, operand 0, single buffered']
    #allocation3 [shape = 's32[1]{0}', space=sflag, size = 0x4, scoped, tag = 'scoped memory for tpu_custom_call.1']
    %11 = vsyncpa [#allocation3], 0
    // Predicated region
    $region2: #{tpu_custom_call.1} parent=1 // pred_check
      _
    $region3: #{tpu_custom_call.1} parent=1 // pred_check_branch
      %13 = sbr.rel (0) target = $region5
    $region4: #{tpu_custom_call.1} parent=1 // pred_region
      _
    $region5: #{tpu_custom_call.1} parent=1 // pred_fallthru
      _
    // Predicated region
    $region6: #{tpu_custom_call.1} parent=1 // pred_check
      _
    $region7: #{tpu_custom_call.1} parent=1 // pred_check_branch
      %15 = sbr.rel (0) target = $region9
    $region8: #{tpu_custom_call.1} parent=1 // pred_region
      _
    $region9: #{tpu_custom_call.1} parent=1 // pred_fallthru
      _
    // Predicated region
    $region10: #{tpu_custom_call.1} parent=1 // pred_check
      _
    $region11: #{tpu_custom_call.1} parent=1 // pred_check_branch
      %17 = sbr.rel (0) target = $region13
    $region12: #{tpu_custom_call.1} parent=1 // pred_region
      _
    $region13: #{tpu_custom_call.1} parent=1 // pred_fallthru
      _
    // Predicated region
    $region14: #{tpu_custom_call.1} parent=1 // pred_check
      _
    $region15: #{tpu_custom_call.1} parent=1 // pred_check_branch
      %19 = sbr.rel (0) target = $region17
    $region16: #{tpu_custom_call.1} parent=1 // pred_region
      _
    $region17: #{tpu_custom_call.1} parent=1 // pred_fallthru
      _
    // Predicated region
    $region18: #{tpu_custom_call.1} parent=1 // pred_check
      _
    $region19: #{tpu_custom_call.1} parent=1 // pred_check_branch
      %21 = sbr.rel (0) target = $region21
    $region20: #{tpu_custom_call.1} parent=1 // pred_region
      _
    $region21: #{tpu_custom_call.1} parent=1 // pred_fallthru
      _
    // Predicated region
    $region22: #{tpu_custom_call.1} parent=1 // pred_check
      _
    $region23: #{tpu_custom_call.1} parent=1 // pred_check_branch
      %23 = sbr.rel (0) target = $region25
    $region24: #{tpu_custom_call.1} parent=1 // pred_region
      _
    $region25: #{tpu_custom_call.1} parent=1 // pred_fallthru
      _
    %v25 = vld [vmem:[%s0] sm:$0xff]
    %v26 = vld [vmem:[%s0 + $0x8] sm:$0xff]
    %v27 = vld [vmem:[%s0 + $0x10] sm:$0xff]
    %v28 = vld [vmem:[%s0 + $0x18] sm:$0xff]
    %v29 = vpack.c.bf16 %v26, %v25
    %v30 = vpack.c.bf16 %v28, %v27
    %v31 = vld [vmem:[%s3] sm:$0xf]
    %v32 = vld [vmem:[%s3 + $0x4] sm:$0xf]
    %v33 = vld [vmem:[%s3 + $0x8] sm:$0xf]
    %v34 = vld [vmem:[%s3 + $0xc] sm:$0xf]
    %v39 = vunpack.c.l.b16 %v31
    %v40 = vunpack.c.l.b16 %v32
    %v41 = vunpack.c.l.b16 %v33
    %v42 = vunpack.c.l.b16 %v34
    %v43 = vpack.c.b16 %v40, %v39
    %v44 = vpack.c.b16 %v42, %v41
    %vm47 = vcmask 261120
    %v49 = vsel %vm47, %v29, 0
    %v52 = vsel %vm47, %v30, 0
    %54 = vmatpush.bf16.msra.mxu0 0
    %55 = vmatpush.bf16.msra.mxu0 0
    %56 = vmatpush.bf16.msra.mxu0 0
    %57 = vmatpush.bf16.msra.mxu0 0
    %58 = vmatpush.bf16.msra.mxu0 0
    %59 = vmatpush.bf16.msra.mxu0 0
    %60 = vmatpush.bf16.msra.mxu0 %v44
    %61 = vmatpush.bf16.msra.mxu0 %v43
    %62 = vmatmul.bf16.gmra.mxu0 %v49
    %v63 = vpop.f32.mrf.mxu0
    %v64 = vadd.f32 0.0, %v63
    %v65 = vpop.f32.mrf.mxu0
    %v66 = vadd.f32 0.0, %v65
    %67 = vmatmul.bf16.gmra.mxu0 %v52
    %v68 = vpop.f32.mrf.mxu0
    %v69 = vadd.f32 0.0, %v68
    %v70 = vpop.f32.mrf.mxu0
    %v71 = vadd.f32 0.0, %v70
    %72 = vdwg.mxu0
    %v73 = vld [vmem:[%s2] sm:$0xff]
    %v74 = vld [vmem:[%s2 + $0x8] sm:$0xff]
    %v75 = vld [vmem:[%s2 + $0x10] sm:$0xff]
    %v76 = vld [vmem:[%s2 + $0x18] sm:$0xff]
    %v77 = vld [vmem:[%s2 + $0x20] sm:$0xff]
    %v78 = vld [vmem:[%s2 + $0x28] sm:$0xff]
    %v79 = vld [vmem:[%s2 + $0x30] sm:$0xff]
    %v80 = vld [vmem:[%s2 + $0x38] sm:$0xff]
    %v81 = vld [vmem:[%s2 + $0x40] sm:$0xff]
    %v82 = vld [vmem:[%s2 + $0x48] sm:$0xff]
    %v83 = vld [vmem:[%s2 + $0x50] sm:$0xff]
    %v84 = vld [vmem:[%s2 + $0x58] sm:$0xff]
    %v85 = vld [vmem:[%s2 + $0x60] sm:$0xff]
    %v86 = vld [vmem:[%s2 + $0x68] sm:$0xff]
    %v87 = vld [vmem:[%s2 + $0x70] sm:$0xff]
    %v88 = vld [vmem:[%s2 + $0x78] sm:$0xff]
    %v89 = vmul.f32 %v64, %v73
    %v90 = vmul.f32 %v66, %v74
    %v91 = vmul.f32 %v69, %v75
    %v92 = vmul.f32 %v71, %v76
    %v93 = vmul.f32 %v64, %v77
    %v94 = vmul.f32 %v66, %v78
    %v95 = vmul.f32 %v69, %v79
    %v96 = vmul.f32 %v71, %v80
    %v97 = vmul.f32 %v64, %v81
    %v98 = vmul.f32 %v66, %v82
    %v99 = vmul.f32 %v69, %v83
    %v100 = vmul.f32 %v71, %v84
    %v101 = vmul.f32 %v64, %v85
    %v102 = vmul.f32 %v66, %v86
    %v103 = vmul.f32 %v69, %v87
    %v104 = vmul.f32 %v71, %v88
    %v105 = vpack.c.bf16 %v90, %v89
    %v106 = vpack.c.bf16 %v92, %v91
    %v107 = vpack.c.bf16 %v94, %v93
    %v108 = vpack.c.bf16 %v96, %v95
    %v109 = vpack.c.bf16 %v98, %v97
    %v110 = vpack.c.bf16 %v100, %v99
    %v111 = vpack.c.bf16 %v102, %v101
    %v112 = vpack.c.bf16 %v104, %v103
    %v113 = vpack.c.bf16 %v66, %v64
    %v114 = vpack.c.bf16 %v71, %v69
    %117 = vrot.lane.b32.xlu0 %v113, 96
    %v118 = vpop.permute.xlu0 %117
    %119 = vrot.lane.b32.xlu0 %v114, 96
    %v120 = vpop.permute.xlu0 %119
    %v122 = vsel %vm47, %v105, 0
    %v125 = vsel %vm47, %v106, 0
    %v128 = vsel %vm47, %v107, 0
    %v131 = vsel %vm47, %v108, 0
    %v134 = vsel %vm47, %v109, 0
    %v137 = vsel %vm47, %v110, 0
    %v140 = vsel %vm47, %v111, 0
    %v143 = vsel %vm47, %v112, 0
    %v146 = vsel %vm47, %v118, 0
    %v149 = vsel %vm47, %v120, 0
    %151 = vmatpush.bf16.xpose.msra.mxu0 0
    %152 = vmatpush.bf16.xpose.msra.mxu0 0
    %153 = vmatpush.bf16.xpose.msra.mxu0 0
    %154 = vmatpush.bf16.xpose.msra.mxu0 0
    %155 = vmatpush.bf16.xpose.msra.mxu0 0
    %156 = vmatpush.bf16.xpose.msra.mxu0 0
    %157 = vmatpush.bf16.xpose.msra.mxu0 %v149
    %158 = vmatpush.bf16.xpose.msra.mxu0 %v146
    %159 = vmatmul.bf16.gmra.mxu0 %v122
    %v160 = vpop.f32.mrf.mxu0
    %v161 = vadd.f32 0.0, %v160
    %v162 = vpop.f32.mrf.mxu0
    %v163 = vadd.f32 0.0, %v162
    %164 = vmatmul.bf16.gmra.mxu0 %v125
    %v165 = vpop.f32.mrf.mxu0
    %v166 = vadd.f32 0.0, %v165
    %v167 = vpop.f32.mrf.mxu0
    %v168 = vadd.f32 0.0, %v167
    %169 = vmatmul.bf16.gmra.mxu0 %v128
    %v170 = vpop.f32.mrf.mxu0
    %v171 = vadd.f32 0.0, %v170
    %v172 = vpop.f32.mrf.mxu0
    %v173 = vadd.f32 0.0, %v172
    %174 = vmatmul.bf16.gmra.mxu0 %v131
    %v175 = vpop.f32.mrf.mxu0
    %v176 = vadd.f32 0.0, %v175
    %v177 = vpop.f32.mrf.mxu0
    %v178 = vadd.f32 0.0, %v177
    %179 = vmatmul.bf16.gmra.mxu0 %v134
    %v180 = vpop.f32.mrf.mxu0
    %v181 = vadd.f32 0.0, %v180
    %v182 = vpop.f32.mrf.mxu0
    %v183 = vadd.f32 0.0, %v182
    %184 = vmatmul.bf16.gmra.mxu0 %v137
    %v185 = vpop.f32.mrf.mxu0
    %v186 = vadd.f32 0.0, %v185
    %v187 = vpop.f32.mrf.mxu0
    %v188 = vadd.f32 0.0, %v187
    %189 = vmatmul.bf16.gmra.mxu0 %v140
    %v190 = vpop.f32.mrf.mxu0
    %v191 = vadd.f32 0.0, %v190
    %v192 = vpop.f32.mrf.mxu0
    %v193 = vadd.f32 0.0, %v192
    %194 = vmatmul.bf16.gmra.mxu0 %v143
    %v195 = vpop.f32.mrf.mxu0
    %v196 = vadd.f32 0.0, %v195
    %v197 = vpop.f32.mrf.mxu0
    %v198 = vadd.f32 0.0, %v197
    %199 = vdwg.mxu0
    %v200 = vld [vmem:[%s1] sm:$0xff]
    %v201 = vld [vmem:[%s1 + $0x8] sm:$0xff]
    %v202 = vld [vmem:[%s1 + $0x10] sm:$0xff]
    %v203 = vld [vmem:[%s1 + $0x18] sm:$0xff]
    %v204 = vmul.f32 %v161, 0.17677669
    %v205 = vmul.f32 %v163, 0.17677669
    %v206 = vmul.f32 %v166, 0.17677669
    %v207 = vmul.f32 %v168, 0.17677669
    %v208 = vmul.f32 %v171, 0.17677669
    %v209 = vmul.f32 %v173, 0.17677669
    %v210 = vmul.f32 %v176, 0.17677669
    %v211 = vmul.f32 %v178, 0.17677669
    %v212 = vmul.f32 %v181, 0.17677669
    %v213 = vmul.f32 %v183, 0.17677669
    %v214 = vmul.f32 %v186, 0.17677669
    %v215 = vmul.f32 %v188, 0.17677669
    %v216 = vmul.f32 %v191, 0.17677669
    %v217 = vmul.f32 %v193, 0.17677669
    %v218 = vmul.f32 %v196, 0.17677669
    %v219 = vmul.f32 %v198, 0.17677669
    %v220 = vadd.f32 %v204, %v200
    %v221 = vadd.f32 %v205, %v201
    %v222 = vadd.f32 %v206, %v202
    %v223 = vadd.f32 %v207, %v203
    %v224 = vadd.f32 %v208, %v200
    %v225 = vadd.f32 %v209, %v201
    %v226 = vadd.f32 %v210, %v202
    %v227 = vadd.f32 %v211, %v203
    %v228 = vadd.f32 %v212, %v200
    %v229 = vadd.f32 %v213, %v201
    %v230 = vadd.f32 %v214, %v202
    %v231 = vadd.f32 %v215, %v203
    %v232 = vadd.f32 %v216, %v200
    %v233 = vadd.f32 %v217, %v201
    %v234 = vadd.f32 %v218, %v202
    %v235 = vadd.f32 %v219, %v203
    %v236 = vsel %vm47, %v220, -inf
    %237 = vmax.xlane.f32.xlu0 %v236
    %v238 = vpop.xlane.xlu0 %237
    %v239 = vsel %vm47, %v221, -inf
    %240 = vmax.xlane.f32.xlu0 %v239
    %v241 = vpop.xlane.xlu0 %240
    %v242 = vsel %vm47, %v222, -inf
    %243 = vmax.xlane.f32.xlu0 %v242
    %v244 = vpop.xlane.xlu0 %243
    %v245 = vsel %vm47, %v223, -inf
    %246 = vmax.xlane.f32.xlu0 %v245
    %v247 = vpop.xlane.xlu0 %246
    %v248 = vsel %vm47, %v224, -inf
    %249 = vmax.xlane.f32.xlu0 %v248
    %v250 = vpop.xlane.xlu0 %249
    %v251 = vsel %vm47, %v225, -inf
    %252 = vmax.xlane.f32.xlu0 %v251
    %v253 = vpop.xlane.xlu0 %252
    %v254 = vsel %vm47, %v226, -inf
    %255 = vmax.xlane.f32.xlu0 %v254
    %v256 = vpop.xlane.xlu0 %255
    %v257 = vsel %vm47, %v227, -inf
    %258 = vmax.xlane.f32.xlu0 %v257
    %v259 = vpop.xlane.xlu0 %258
    %v260 = vsel %vm47, %v228, -inf
    %261 = vmax.xlane.f32.xlu0 %v260
    %v262 = vpop.xlane.xlu0 %261
    %v263 = vsel %vm47, %v229, -inf
    %264 = vmax.xlane.f32.xlu0 %v263
    %v265 = vpop.xlane.xlu0 %264
    %v266 = vsel %vm47, %v230, -inf
    %267 = vmax.xlane.f32.xlu0 %v266
    %v268 = vpop.xlane.xlu0 %267
    %v269 = vsel %vm47, %v231, -inf
    %270 = vmax.xlane.f32.xlu0 %v269
    %v271 = vpop.xlane.xlu0 %270
    %v272 = vsel %vm47, %v232, -inf
    %273 = vmax.xlane.f32.xlu0 %v272
    %v274 = vpop.xlane.xlu0 %273
    %v275 = vsel %vm47, %v233, -inf
    %276 = vmax.xlane.f32.xlu0 %v275
    %v277 = vpop.xlane.xlu0 %276
    %v278 = vsel %vm47, %v234, -inf
    %279 = vmax.xlane.f32.xlu0 %v278
    %v280 = vpop.xlane.xlu0 %279
    %v281 = vsel %vm47, %v235, -inf
    %282 = vmax.xlane.f32.xlu0 %v281
    %v283 = vpop.xlane.xlu0 %282
    %v284 = vsub.f32 %v220, %v238
    %v285 = vsub.f32 %v221, %v241
    %v286 = vsub.f32 %v222, %v244
    %v287 = vsub.f32 %v223, %v247
    %v288 = vsub.f32 %v224, %v250
    %v289 = vsub.f32 %v225, %v253
    %v290 = vsub.f32 %v226, %v256
    %v291 = vsub.f32 %v227, %v259
    %v292 = vsub.f32 %v228, %v262
    %v293 = vsub.f32 %v229, %v265
    %v294 = vsub.f32 %v230, %v268
    %v295 = vsub.f32 %v231, %v271
    %v296 = vsub.f32 %v232, %v274
    %v297 = vsub.f32 %v233, %v277
    %v298 = vsub.f32 %v234, %v280
    %v299 = vsub.f32 %v235, %v283
    %v300 = vmul.f32 %v284, 1.442695
    %v301 = vpow.pop %v300
    %v302 = vmul.f32 %v285, 1.442695
    %v303 = vpow.pop %v302
    %v304 = vmul.f32 %v286, 1.442695
    %v305 = vpow.pop %v304
    %v306 = vmul.f32 %v287, 1.442695
    %v307 = vpow.pop %v306
    %v308 = vmul.f32 %v288, 1.442695
    %v309 = vpow.pop %v308
    %v310 = vmul.f32 %v289, 1.442695
    %v311 = vpow.pop %v310
    %v312 = vmul.f32 %v290, 1.442695
    %v313 = vpow.pop %v312
    %v314 = vmul.f32 %v291, 1.442695
    %v315 = vpow.pop %v314
    %v316 = vmul.f32 %v292, 1.442695
    %v317 = vpow.pop %v316
    %v318 = vmul.f32 %v293, 1.442695
    %v319 = vpow.pop %v318
    %v320 = vmul.f32 %v294, 1.442695
    %v321 = vpow.pop %v320
    %v322 = vmul.f32 %v295, 1.442695
    %v323 = vpow.pop %v322
    %v324 = vmul.f32 %v296, 1.442695
    %v325 = vpow.pop %v324
    %v326 = vmul.f32 %v297, 1.442695
    %v327 = vpow.pop %v326
    %v328 = vmul.f32 %v298, 1.442695
    %v329 = vpow.pop %v328
    %v330 = vmul.f32 %v299, 1.442695
    %v331 = vpow.pop %v330
    %v332 = vsel %vm47, %v301, 0.0
    %333 = vadd.xlane.f32.xlu0 %v332
    %v334 = vpop.xlane.xlu0 %333
    %v335 = vsel %vm47, %v303, 0.0
    %336 = vadd.xlane.f32.xlu0 %v335
    %v337 = vpop.xlane.xlu0 %336
    %v338 = vsel %vm47, %v305, 0.0
    %339 = vadd.xlane.f32.xlu0 %v338
    %v340 = vpop.xlane.xlu0 %339
    %v341 = vsel %vm47, %v307, 0.0
    %342 = vadd.xlane.f32.xlu0 %v341
    %v343 = vpop.xlane.xlu0 %342
    %v344 = vsel %vm47, %v309, 0.0
    %345 = vadd.xlane.f32.xlu0 %v344
    %v346 = vpop.xlane.xlu0 %345
    %v347 = vsel %vm47, %v311, 0.0
    %348 = vadd.xlane.f32.xlu0 %v347
    %v349 = vpop.xlane.xlu0 %348
    %v350 = vsel %vm47, %v313, 0.0
    %351 = vadd.xlane.f32.xlu0 %v350
    %v352 = vpop.xlane.xlu0 %351
    %v353 = vsel %vm47, %v315, 0.0
    %354 = vadd.xlane.f32.xlu0 %v353
    %v355 = vpop.xlane.xlu0 %354
    %v356 = vsel %vm47, %v317, 0.0
    %357 = vadd.xlane.f32.xlu0 %v356
    %v358 = vpop.xlane.xlu0 %357
    %v359 = vsel %vm47, %v319, 0.0
    %360 = vadd.xlane.f32.xlu0 %v359
    %v361 = vpop.xlane.xlu0 %360
    %v362 = vsel %vm47, %v321, 0.0
    %363 = vadd.xlane.f32.xlu0 %v362
    %v364 = vpop.xlane.xlu0 %363
    %v365 = vsel %vm47, %v323, 0.0
    %366 = vadd.xlane.f32.xlu0 %v365
    %v367 = vpop.xlane.xlu0 %366
    %v368 = vsel %vm47, %v325, 0.0
    %369 = vadd.xlane.f32.xlu0 %v368
    %v370 = vpop.xlane.xlu0 %369
    %v371 = vsel %vm47, %v327, 0.0
    %372 = vadd.xlane.f32.xlu0 %v371
    %v373 = vpop.xlane.xlu0 %372
    %v374 = vsel %vm47, %v329, 0.0
    %375 = vadd.xlane.f32.xlu0 %v374
    %v376 = vpop.xlane.xlu0 %375
    %v377 = vsel %vm47, %v331, 0.0
    %378 = vadd.xlane.f32.xlu0 %v377
    %v379 = vpop.xlane.xlu0 %378
    %v380 = vrcp.pop %v334
    %v381 = vrcp.pop %v337
    %v382 = vrcp.pop %v340
    %v383 = vrcp.pop %v343
    %v384 = vrcp.pop %v346
    %v385 = vrcp.pop %v349
    %v386 = vrcp.pop %v352
    %v387 = vrcp.pop %v355
    %v388 = vrcp.pop %v358
    %v389 = vrcp.pop %v361
    %v390 = vrcp.pop %v364
    %v391 = vrcp.pop %v367
    %v392 = vrcp.pop %v370
    %v393 = vrcp.pop %v373
    %v394 = vrcp.pop %v376
    %v395 = vrcp.pop %v379
    %v396 = vmul.f32 %v301, %v380
    %v397 = vmul.f32 %v303, %v381
    %v398 = vmul.f32 %v305, %v382
    %v399 = vmul.f32 %v307, %v383
    %v400 = vmul.f32 %v309, %v384
    %v401 = vmul.f32 %v311, %v385
    %v402 = vmul.f32 %v313, %v386
    %v403 = vmul.f32 %v315, %v387
    %v404 = vmul.f32 %v317, %v388
    %v405 = vmul.f32 %v319, %v389
    %v406 = vmul.f32 %v321, %v390
    %v407 = vmul.f32 %v323, %v391
    %v408 = vmul.f32 %v325, %v392
    %v409 = vmul.f32 %v327, %v393
    %v410 = vmul.f32 %v329, %v394
    %v411 = vmul.f32 %v331, %v395
    %v412 = vpack.c.bf16 %v397, %v396
    %v413 = vpack.c.bf16 %v399, %v398
    %v414 = vpack.c.bf16 %v401, %v400
    %v415 = vpack.c.bf16 %v403, %v402
    %v416 = vpack.c.bf16 %v405, %v404
    %v417 = vpack.c.bf16 %v407, %v406
    %v418 = vpack.c.bf16 %v409, %v408
    %v419 = vpack.c.bf16 %v411, %v410
    %420 = vrot.lane.b32.xlu0 %v113, 64
    %v421 = vpop.permute.xlu0 %420
    %422 = vrot.lane.b32.xlu0 %v114, 64
    %v423 = vpop.permute.xlu0 %422
    %v427 = vsel %vm47, %v412, 0
    %v430 = vsel %vm47, %v413, 0
    %v433 = vsel %vm47, %v414, 0
    %v436 = vsel %vm47, %v415, 0
    %v439 = vsel %vm47, %v416, 0
    %v442 = vsel %vm47, %v417, 0
    %v445 = vsel %vm47, %v418, 0
    %v448 = vsel %vm47, %v419, 0
    %450 = vmatpush.bf16.msra.mxu0 0
    %451 = vmatpush.bf16.msra.mxu0 0
    %452 = vmatpush.bf16.msra.mxu0 0
    %453 = vmatpush.bf16.msra.mxu0 0
    %454 = vmatpush.bf16.msra.mxu0 0
    %455 = vmatpush.bf16.msra.mxu0 0
    %456 = vmatpush.bf16.msra.mxu0 %v423
    %457 = vmatpush.bf16.msra.mxu0 %v421
    %458 = vmatmul.bf16.gmra.mxu0 %v427
    %v459 = vpop.f32.mrf.mxu0
    %v460 = vadd.f32 0.0, %v459
    %v461 = vpop.f32.mrf.mxu0
    %v462 = vadd.f32 0.0, %v461
    %463 = vmatmul.bf16.gmra.mxu0 %v430
    %v464 = vpop.f32.mrf.mxu0
    %v465 = vadd.f32 0.0, %v464
    %v466 = vpop.f32.mrf.mxu0
    %v467 = vadd.f32 0.0, %v466
    %468 = vmatmul.bf16.gmra.mxu0 %v433
    %v469 = vpop.f32.mrf.mxu0
    %v470 = vadd.f32 0.0, %v469
    %v471 = vpop.f32.mrf.mxu0
    %v472 = vadd.f32 0.0, %v471
    %473 = vmatmul.bf16.gmra.mxu0 %v436
    %v474 = vpop.f32.mrf.mxu0
    %v475 = vadd.f32 0.0, %v474
    %v476 = vpop.f32.mrf.mxu0
    %v477 = vadd.f32 0.0, %v476
    %478 = vmatmul.bf16.gmra.mxu0 %v439
    %v479 = vpop.f32.mrf.mxu0
    %v480 = vadd.f32 0.0, %v479
    %v481 = vpop.f32.mrf.mxu0
    %v482 = vadd.f32 0.0, %v481
    %483 = vmatmul.bf16.gmra.mxu0 %v442
    %v484 = vpop.f32.mrf.mxu0
    %v485 = vadd.f32 0.0, %v484
    %v486 = vpop.f32.mrf.mxu0
    %v487 = vadd.f32 0.0, %v486
    %488 = vmatmul.bf16.gmra.mxu0 %v445
    %v489 = vpop.f32.mrf.mxu0
    %v490 = vadd.f32 0.0, %v489
    %v491 = vpop.f32.mrf.mxu0
    %v492 = vadd.f32 0.0, %v491
    %493 = vmatmul.bf16.gmra.mxu0 %v448
    %v494 = vpop.f32.mrf.mxu0
    %v495 = vadd.f32 0.0, %v494
    %v496 = vpop.f32.mrf.mxu0
    %v497 = vadd.f32 0.0, %v496
    %498 = vdwg.mxu0
    %v499 = vmul.f32 %v460, %v73
    %v500 = vmul.f32 %v462, %v74
    %v501 = vmul.f32 %v465, %v75
    %v502 = vmul.f32 %v467, %v76
    %v503 = vmul.f32 %v470, %v77
    %v504 = vmul.f32 %v472, %v78
    %v505 = vmul.f32 %v475, %v79
    %v506 = vmul.f32 %v477, %v80
    %v507 = vmul.f32 %v480, %v81
    %v508 = vmul.f32 %v482, %v82
    %v509 = vmul.f32 %v485, %v83
    %v510 = vmul.f32 %v487, %v84
    %v511 = vmul.f32 %v490, %v85
    %v512 = vmul.f32 %v492, %v86
    %v513 = vmul.f32 %v495, %v87
    %v514 = vmul.f32 %v497, %v88
    %v515 = vadd.f32 %v499, %v503
    %v516 = vadd.f32 %v500, %v504
    %v517 = vadd.f32 %v501, %v505
    %v518 = vadd.f32 %v502, %v506
    %v519 = vadd.f32 %v515, %v507
    %v520 = vadd.f32 %v516, %v508
    %v521 = vadd.f32 %v517, %v509
    %v522 = vadd.f32 %v518, %v510
    %v523 = vadd.f32 %v519, %v511
    %v524 = vadd.f32 %v520, %v512
    %v525 = vadd.f32 %v521, %v513
    %v526 = vadd.f32 %v522, %v514
    %v527 = vld [vmem:[%s5] sm:$0x7]
    %v528 = vpack.c.bf16 %v524, %v523
    %v529 = vpack.c.bf16 %v526, %v525
    %v530 = vld [vmem:[%s4] sm:$0xf]
    %v531 = vld [vmem:[%s4 + $0x4] sm:$0xf]
    %v532 = vld [vmem:[%s4 + $0x8] sm:$0xf]
    %v533 = vld [vmem:[%s4 + $0xc] sm:$0xf]
    %v538 = vunpack.c.l.b16 %v530
    %v539 = vunpack.c.l.b16 %v531
    %v540 = vunpack.c.l.b16 %v532
    %v541 = vunpack.c.l.b16 %v533
    %v542 = vpack.c.b16 %v539, %v538
    %v543 = vpack.c.b16 %v541, %v540
    %v547 = vsel %vm47, %v528, 0
    %v550 = vsel %vm47, %v529, 0
    %552 = vmatpush.bf16.msra.mxu0 0
    %553 = vmatpush.bf16.msra.mxu0 0
    %554 = vmatpush.bf16.msra.mxu0 0
    %555 = vmatpush.bf16.msra.mxu0 0
    %556 = vmatpush.bf16.msra.mxu0 0
    %557 = vmatpush.bf16.msra.mxu0 0
    %558 = vmatpush.bf16.msra.mxu0 %v543
    %559 = vmatpush.bf16.msra.mxu0 %v542
    %560 = vmatmul.bf16.gmra.mxu0 %v547
    %v561 = vpop.f32.mrf.mxu0
    %v562 = vadd.f32 0.0, %v561
    %v563 = vpop.f32.mrf.mxu0
    %v564 = vadd.f32 0.0, %v563
    %565 = vmatmul.bf16.gmra.mxu0 %v550
    %v566 = vpop.f32.mrf.mxu0
    %v567 = vadd.f32 0.0, %v566
    %v568 = vpop.f32.mrf.mxu0
    %v569 = vadd.f32 0.0, %v568
    %570 = vdwg.mxu0
    %575 = vrot.lane.b32.xlu0 %v562, 96
    %v576 = vpop.permute.xlu0 %575
    %577 = vrot.lane.b32.xlu0 %v564, 96
    %v578 = vpop.permute.xlu0 %577
    %579 = vrot.lane.b32.xlu0 %v567, 96
    %v580 = vpop.permute.xlu0 %579
    %581 = vrot.lane.b32.xlu0 %v569, 96
    %v582 = vpop.permute.xlu0 %581
    %v587 = vadd.f32 %v64, %v576
    %v588 = vadd.f32 %v66, %v578
    %v589 = vadd.f32 %v69, %v580
    %v590 = vadd.f32 %v71, %v582
    %v591 = vperm.slane %v527, 0
    %593 = vrot.lane.b32.xlu0 %v591, 96
    %v594 = vpop.permute.xlu0 %593
    %v596 = vadd.f32 %v587, %v594
    %v597 = vadd.f32 %v588, %v594
    %v598 = vadd.f32 %v589, %v594
    %v599 = vadd.f32 %v590, %v594
    %v600 = vmax.f32 %v596, 0.0
    %v601 = vmax.f32 %v597, 0.0
    %v602 = vmax.f32 %v598, 0.0
    %v603 = vmax.f32 %v599, 0.0
    %608 = vrot.lane.b32.xlu0 %v25, 96
    %v609 = vpop.permute.xlu0 %608
    %610 = vrot.lane.b32.xlu0 %v26, 96
    %v611 = vpop.permute.xlu0 %610
    %612 = vrot.lane.b32.xlu0 %v27, 96
    %v613 = vpop.permute.xlu0 %612
    %614 = vrot.lane.b32.xlu0 %v28, 96
    %v615 = vpop.permute.xlu0 %614
    %v620 = vadd.f32 %v600, %v609
    %v621 = vadd.f32 %v601, %v611
    %v622 = vadd.f32 %v602, %v613
    %v623 = vadd.f32 %v603, %v615
    %628 = vrot.lane.b32.xlu0 %v620, 32
    %v629 = vpop.permute.xlu0 %628
    %630 = vrot.lane.b32.xlu0 %v621, 32
    %v631 = vpop.permute.xlu0 %630
    %632 = vrot.lane.b32.xlu0 %v622, 32
    %v633 = vpop.permute.xlu0 %632
    %634 = vrot.lane.b32.xlu0 %v623, 32
    %v635 = vpop.permute.xlu0 %634
    %v640 = vsel %vm47, %v629, 0.0
    %641 = vadd.xlane.f32.xlu0 %v640
    %v642 = vpop.xlane.xlu0 %641
    %v643 = vsel %vm47, %v631, 0.0
    %644 = vadd.xlane.f32.xlu0 %v643
    %v645 = vpop.xlane.xlu0 %644
    %v646 = vsel %vm47, %v633, 0.0
    %647 = vadd.xlane.f32.xlu0 %v646
    %v648 = vpop.xlane.xlu0 %647
    %v649 = vsel %vm47, %v635, 0.0
    %650 = vadd.xlane.f32.xlu0 %v649
    %v651 = vpop.xlane.xlu0 %650
    %v652 = vrcp.pop 32.0
    %v653 = vmul.f32 32.0, %v652
    %v654 = vsub.f32 1.0, %v653
    %v655 = vmul.f32 %v652, %v654
    %v656 = vadd.f32 %v652, %v655
    %vm657 = vweird.f32 %v652
    %v658 = vsel %vm657, %v652, %v656
    %v659 = vmul.f32 %v642, %v658
    %v660 = vmul.f32 %v645, %v658
    %v661 = vmul.f32 %v648, %v658
    %v662 = vmul.f32 %v651, %v658
    %v663 = vsub.f32 %v620, %v659
    %v664 = vsub.f32 %v621, %v660
    %v665 = vsub.f32 %v622, %v661
    %v666 = vsub.f32 %v623, %v662
    %v667 = vmul.f32 %v663, %v663
    %v668 = vmul.f32 %v664, %v664
    %v669 = vmul.f32 %v665, %v665
    %v670 = vmul.f32 %v666, %v666
    %675 = vrot.lane.b32.xlu0 %v667, 32
    %v676 = vpop.permute.xlu0 %675
    %677 = vrot.lane.b32.xlu0 %v668, 32
    %v678 = vpop.permute.xlu0 %677
    %679 = vrot.lane.b32.xlu0 %v669, 32
    %v680 = vpop.permute.xlu0 %679
    %681 = vrot.lane.b32.xlu0 %v670, 32
    %v682 = vpop.permute.xlu0 %681
    %v687 = vsel %vm47, %v676, 0.0
    %688 = vadd.xlane.f32.xlu0 %v687
    %v689 = vpop.xlane.xlu0 %688
    %v690 = vsel %vm47, %v678, 0.0
    %691 = vadd.xlane.f32.xlu0 %v690
    %v692 = vpop.xlane.xlu0 %691
    %v693 = vsel %vm47, %v680, 0.0
    %694 = vadd.xlane.f32.xlu0 %v693
    %v695 = vpop.xlane.xlu0 %694
    %v696 = vsel %vm47, %v682, 0.0
    %697 = vadd.xlane.f32.xlu0 %v696
    %v698 = vpop.xlane.xlu0 %697
    %v699 = vmul.f32 %v689, %v658
    %v700 = vmul.f32 %v692, %v658
    %v701 = vmul.f32 %v695, %v658
    %v702 = vmul.f32 %v698, %v658
    %v703 = vadd.f32 %v699, 1e-05
    %v704 = vadd.f32 %v700, 1e-05
    %v705 = vadd.f32 %v701, 1e-05
    %v706 = vadd.f32 %v702, 1e-05
    %v707 = vrsqrt.pop %v703
    %v708 = vmul.f32 %v707, %v703
    %v709 = vmul.f32 %v708, %v707
    %v710 = vmul.f32 0.5, %v709
    %v711 = vsub.f32 1.5, %v710
    %v712 = vmul.f32 %v707, %v711
    %vm713 = vweird.f32 %v703
    %vm714 = vweird.f32 %v707
    %vm715 = vmor %vm713, %vm714
    %v716 = vsel %vm715, %v707, %v712
    %v717 = vrsqrt.pop %v704
    %v718 = vmul.f32 %v717, %v704
    %v719 = vmul.f32 %v718, %v717
    %v720 = vmul.f32 0.5, %v719
    %v721 = vsub.f32 1.5, %v720
    %v722 = vmul.f32 %v717, %v721
    %vm723 = vweird.f32 %v704
    %vm724 = vweird.f32 %v717
    %vm725 = vmor %vm723, %vm724
    %v726 = vsel %vm725, %v717, %v722
    %v727 = vrsqrt.pop %v705
    %v728 = vmul.f32 %v727, %v705
    %v729 = vmul.f32 %v728, %v727
    %v730 = vmul.f32 0.5, %v729
    %v731 = vsub.f32 1.5, %v730
    %v732 = vmul.f32 %v727, %v731
    %vm733 = vweird.f32 %v705
    %vm734 = vweird.f32 %v727
    %vm735 = vmor %vm733, %vm734
    %v736 = vsel %vm735, %v727, %v732
    %v737 = vrsqrt.pop %v706
    %v738 = vmul.f32 %v737, %v706
    %v739 = vmul.f32 %v738, %v737
    %v740 = vmul.f32 0.5, %v739
    %v741 = vsub.f32 1.5, %v740
    %v742 = vmul.f32 %v737, %v741
    %vm743 = vweird.f32 %v706
    %vm744 = vweird.f32 %v737
    %vm745 = vmor %vm743, %vm744
    %v746 = vsel %vm745, %v737, %v742
    %v747 = vmul.f32 %v663, %v716
    %v748 = vmul.f32 %v664, %v726
    %v749 = vmul.f32 %v665, %v736
    %v750 = vmul.f32 %v666, %v746
    %v751 = vperm.slane %v527, 1
    %753 = vrot.lane.b32.xlu0 %v751, 96
    %v754 = vpop.permute.xlu0 %753
    %v756 = vmul.f32 %v747, %v754
    %v757 = vmul.f32 %v748, %v754
    %v758 = vmul.f32 %v749, %v754
    %v759 = vmul.f32 %v750, %v754
    %v760 = vperm.slane %v527, 2
    %762 = vrot.lane.b32.xlu0 %v760, 96
    %v763 = vpop.permute.xlu0 %762
    %v765 = vadd.f32 %v756, %v763
    %v766 = vadd.f32 %v757, %v763
    %v767 = vadd.f32 %v758, %v763
    %v768 = vadd.f32 %v759, %v763
    %773 = vrot.lane.b32.xlu0 %v765, 32
    %v774 = vpop.permute.xlu0 %773
    %775 = vrot.lane.b32.xlu0 %v766, 32
    %v776 = vpop.permute.xlu0 %775
    %777 = vrot.lane.b32.xlu0 %v767, 32
    %v778 = vpop.permute.xlu0 %777
    %779 = vrot.lane.b32.xlu0 %v768, 32
    %v780 = vpop.permute.xlu0 %779
    %785 = vst.msk [vmem:[#allocation2] sm:$0xff] %vm47, %v774
    %786 = vst.msk [vmem:[#allocation2 + $0x8] sm:$0xff] %vm47, %v776
    %787 = vst.msk [vmem:[#allocation2 + $0x10] sm:$0xff] %vm47, %v778
    %788 = vst.msk [vmem:[#allocation2 + $0x18] sm:$0xff] %vm47, %v780
    // Predicated region
    $region26: #{tpu_custom_call.1} parent=1 // pred_check
      _
    $region27: #{tpu_custom_call.1} parent=1 // pred_check_branch
      %790 = sbr.rel (0) target = $region29
    $region28: #{tpu_custom_call.1} parent=1 // pred_region
      %792 = vsyncadd [#allocation3], 0
      %s793 = sshll.u32 [#allocation2], 4
      %s794 = int_to_ptr.vmem [resolvable:$true] %s793
      %s795 = sshll.u32 %s6, 4
      %s796 = int_to_ptr.hbm [resolvable:$true] %s795
      %801 = dma.vmem_to_hbm [thread:$0]  %s794, 512, %s796, [#allocation3], 128, 128, 8
    $region29: #{tpu_custom_call.1} parent=1 // pred_fallthru
      _
    // Predicated region
    $region30: #{tpu_custom_call.1} parent=1 // pred_check
      _
    $region31: #{tpu_custom_call.1} parent=1 // pred_check_branch
      %803 = sbr.rel (0) target = $region33
    $region32: #{tpu_custom_call.1} parent=1 // pred_region
      %805 = dma.done [#allocation3], 512
    $region33: #{tpu_custom_call.1} parent=1 // pred_fallthru
      _
    %806 = vsyncpa [#allocation3], 1

</llo_original>
